<compile_context>
chip_gen: v5e
topology: v5e:2x2
jax: 0.10.0
libtpu: 0.0.40
codegen_flags: <defaults>
</compile_context>

<pallas_src>
import jax
import jax.numpy as jnp
from jax.experimental import pallas as pl
from jax.experimental.pallas import tpu as pltpu

DROPOUT_P = 0.2
BN_EPS = 1e-5
# round((1 - p) * 2**32): full 32-bit keep threshold (exact 0.8, unlike int(0.8*65536)).
KEEP_THRESHOLD_U32 = int(round((1.0 - DROPOUT_P) * (2 ** 32)))  # 3435973837


def _batchnorm_train(h, gamma, beta):
    """Training-mode BatchNorm1d (batch stats, biased variance), folded to one FMA."""
    mean = jnp.mean(h, axis=0, keepdims=True)
    var = jnp.mean(jnp.square(h - mean), axis=0, keepdims=True)
    scale = jax.lax.rsqrt(var + BN_EPS) * gamma          # (1, F)
    shift = beta - mean * scale                          # (1, F)
    return h * scale + shift                             # single per-element FMA


def _dropout_keep_mask(shape, seed_i32):
    """Counter-based PRNG (murmur3 fmix32 bit pattern) evaluated purely in int32.

    Logical right shifts are emulated as arithmetic-shift + mask, and the final
    unsigned `< threshold` compare is done via a sign-bit flip, so every op is a
    plain int32 VPU op (lowers on Mosaic and in interpret mode alike).
    """
    rows = jax.lax.broadcasted_iota(jnp.int32, shape, 0)
    cols = jax.lax.broadcasted_iota(jnp.int32, shape, 1)
    # TODO(synk): if this kernel is ever batch-tiled with a grid, also mix
    # pl.program_id(0) into the seed so tiles do not reuse the same dropout mask.
    k = rows * shape[1] + cols + seed_i32 * jnp.int32(-1640531527)   # 0x9E3779B9
    k = (k ^ ((k >> 16) & 0xFFFF)) * jnp.int32(-2048144789)          # 0x85EBCA6B
    k = (k ^ ((k >> 13) & 0x7FFFF)) * jnp.int32(-1028477387)         # 0xC2B2AE35
    k = k ^ ((k >> 16) & 0xFFFF)
    # keep iff (uint32)k < KEEP_THRESHOLD_U32  (unsigned compare via sign flip).
    return (k ^ jnp.int32(-(2 ** 31))) < jnp.int32(KEEP_THRESHOLD_U32 - 2 ** 31)


def generator_kernel(seed_ref,
                     z_ref, c_ref,
                     w1z_ref, w1c_ref, b1_ref, g1_ref, bt1_ref,
                     w2_ref, b2_ref, g2_ref, bt2_ref,
                     w3_ref, b3_ref,
                     w4_ref, b4_ref,
                     out_ref):
    # Linear(latent+cond -> H) as two split bf16 matmuls (no concatenated input),
    # then ReLU + BatchNorm1d (all post-matmul math in f32).
    h = (jnp.dot(z_ref[...], w1z_ref[...], preferred_element_type=jnp.float32)
         + jnp.dot(c_ref[...], w1c_ref[...], preferred_element_type=jnp.float32)
         + b1_ref[...])
    h = jnp.maximum(h, 0.0)
    h = _batchnorm_train(h, g1_ref[...], bt1_ref[...])

    # Linear(H -> H) + ReLU + BatchNorm1d.
    h = jnp.dot(h.astype(jnp.bfloat16), w2_ref[...],
                preferred_element_type=jnp.float32) + b2_ref[...]
    h = jnp.maximum(h, 0.0)
    h = _batchnorm_train(h, g2_ref[...], bt2_ref[...])

    # Linear(H -> H//2) + ReLU + Dropout(0.2) (inverted dropout, train mode).
    h = jnp.dot(h.astype(jnp.bfloat16), w3_ref[...],
                preferred_element_type=jnp.float32) + b3_ref[...]
    h = jnp.maximum(h, 0.0)
    keep = _dropout_keep_mask(h.shape, seed_ref[0])
    # TODO(synk): PyTorch's exact dropout RNG stream is not reproducible; the mask
    # matches Bernoulli(keep=0.8) exactly in distribution, not in bit pattern.
    h = jnp.where(keep, h * (1.0 / (1.0 - DROPOUT_P)), 0.0)

    # Linear(H//2 -> 1) + Sigmoid.  Computed as w4 (1, H/2) · h^T -> (1, batch) so the
    # single output store is lane-dense (batch on the lane axis); the divide rides the
    # EUP via approx reciprocal.
    logits = jax.lax.dot_general(
        w4_ref[...], h.astype(jnp.bfloat16),
        (((1,), (1,)), ((), ())),
        preferred_element_type=jnp.float32) + b4_ref[...]           # (1, batch)
    out_ref[...] = pl.reciprocal(1.0 + jnp.exp(-logits), approx=True)


def generator_forward(z, cond, params, seed=0):
    batch = z.shape[0]
    # bf16 only for MXU operands (halves weight/activation DMA, 2x MXU throughput on
    # v6e/v7x); biases / BN params and all element-wise math stay f32.
    inputs = (
        jnp.asarray([seed], dtype=jnp.int32),
        z.astype(jnp.bfloat16), cond.astype(jnp.bfloat16),
        params["w1z"].astype(jnp.bfloat16), params["w1c"].astype(jnp.bfloat16),
        params["b1"], params["g1"], params["bt1"],
        params["w2"].astype(jnp.bfloat16), params["b2"], params["g2"], params["bt2"],
        params["w3"].astype(jnp.bfloat16), params["b3"],
        params["w4"].astype(jnp.bfloat16), params["b4"],
    )
    smem = pl.BlockSpec(memory_space=pltpu.MemorySpace.SMEM)
    vmem = pl.BlockSpec(memory_space=pltpu.MemorySpace.VMEM)
    out_row = pl.pallas_call(
        generator_kernel,
        out_shape=jax.ShapeDtypeStruct((1, batch), jnp.float32),   # lane-dense output
        in_specs=[smem] + [vmem] * (len(inputs) - 1),
        out_specs=vmem,
    )(*inputs)
    # Transpose back to the PyTorch (batch, 1) convention outside the kernel.
    return out_row.T


def init_params(key, latent_dim, condition_dim, hidden_size):
    """Deterministic init mirroring nn.Linear defaults (U(-1/sqrt(fan_in), +)) and
    nn.BatchNorm1d defaults (gamma=1, beta=0).  Weights stored as (in, out); w1 is
    pre-split into z / cond halves; w4 is kept as a (1, H/2) row vector."""
    h, h2 = hidden_size, hidden_size // 2
    in_dim = latent_dim + condition_dim
    keys = jax.random.split(key, 8)

    def unif(k, shape, fan_in):
        b = 1.0 / (fan_in ** 0.5)
        return jax.random.uniform(k, shape, jnp.float32, -b, b)

    w1 = unif(keys[0], (in_dim, h), in_dim)
    return {
        "w1z": w1[:latent_dim], "w1c": w1[latent_dim:],
        "b1": unif(keys[1], (1, h), in_dim),
        "g1": jnp.ones((1, h), jnp.float32), "bt1": jnp.zeros((1, h), jnp.float32),
        "w2": unif(keys[2], (h, h), h),
        "b2": unif(keys[3], (1, h), h),
        "g2": jnp.ones((1, h), jnp.float32), "bt2": jnp.zeros((1, h), jnp.float32),
        "w3": unif(keys[4], (h, h2), h),
        "b3": unif(keys[5], (1, h2), h),
        "w4": unif(keys[6], (1, h2), h2),     # (out, in) row vector for the NT matmul
        "b4": unif(keys[7], (1, 1), h2),
    }


if __name__ == "__main__":
    latent_dim, condition_dim, hidden_size, batch = 16, 8, 64, 8

    key = jax.random.PRNGKey(0)
    kz, kc, kp = jax.random.split(key, 3)
    z = jax.random.normal(kz, (batch, latent_dim), jnp.float32)
    cond = jax.random.normal(kc, (batch, condition_dim), jnp.float32)
    params = init_params(kp, latent_dim, condition_dim, hidden_size)

    out = generator_forward(z, cond, params, seed=0)
    out = jax.block_until_ready(out)

    assert out.shape == (batch, 1) and out.dtype == jnp.float32
    assert bool(jnp.all(jnp.isfinite(out)))
    # approx-reciprocal sigmoid may overshoot [0, 1] by a tiny epsilon at the extremes.
    assert bool(jnp.all((out > -1e-2) & (out < 1.0 + 1e-2)))
    print("KERNEL_OK")
</pallas_src>

<mosaic_0001>
module attributes {stable_mosaic.version = 11 : i64} {
  func.func @generator_kernel(%arg0: memref<1xi32, #tpu.memory_space<smem>>, %arg1: memref<8x16xbf16, #tpu.memory_space<vmem>>, %arg2: memref<8x8xbf16, #tpu.memory_space<vmem>>, %arg3: memref<16x64xbf16, #tpu.memory_space<vmem>>, %arg4: memref<8x64xbf16, #tpu.memory_space<vmem>>, %arg5: memref<1x64xf32, #tpu.memory_space<vmem>>, %arg6: memref<1x64xf32, #tpu.memory_space<vmem>>, %arg7: memref<1x64xf32, #tpu.memory_space<vmem>>, %arg8: memref<64x64xbf16, #tpu.memory_space<vmem>>, %arg9: memref<1x64xf32, #tpu.memory_space<vmem>>, %arg10: memref<1x64xf32, #tpu.memory_space<vmem>>, %arg11: memref<1x64xf32, #tpu.memory_space<vmem>>, %arg12: memref<64x32xbf16, #tpu.memory_space<vmem>>, %arg13: memref<1x32xf32, #tpu.memory_space<vmem>>, %arg14: memref<1x32xbf16, #tpu.memory_space<vmem>>, %arg15: memref<1x1xf32, #tpu.memory_space<vmem>>, %arg16: memref<1x8xf32, #tpu.memory_space<vmem>>) attributes {dimension_semantics = [], scalar_prefetch = 0 : i64, scratch_operands = 0 : i64, tpu.core_type = #tpu.core_type<tc>} {
    %c0 = arith.constant 0 : index
    %c0_0 = arith.constant 0 : index
    %0 = vector.load %arg1[%c0, %c0_0] : memref<8x16xbf16, #tpu.memory_space<vmem>>, vector<8x16xbf16>
    %c0_1 = arith.constant 0 : index
    %c0_2 = arith.constant 0 : index
    %1 = vector.load %arg3[%c0_1, %c0_2] : memref<16x64xbf16, #tpu.memory_space<vmem>>, vector<16x64xbf16>
    %cst = arith.constant dense<0.000000e+00> : vector<8x64xf32>
    %2 = tpu.matmul %0, %1, %cst {dimension_numbers = #tpu.dot_dimension_numbers<[1], [0], [0], [1], [0, 0, 1, 1], [], []>} : vector<8x16xbf16>, vector<16x64xbf16>, vector<8x64xf32> -> vector<8x64xf32>
    %c0_3 = arith.constant 0 : index
    %c0_4 = arith.constant 0 : index
    %3 = vector.load %arg2[%c0_3, %c0_4] : memref<8x8xbf16, #tpu.memory_space<vmem>>, vector<8x8xbf16>
    %c0_5 = arith.constant 0 : index
    %c0_6 = arith.constant 0 : index
    %4 = vector.load %arg4[%c0_5, %c0_6] : memref<8x64xbf16, #tpu.memory_space<vmem>>, vector<8x64xbf16>
    %cst_7 = arith.constant dense<0.000000e+00> : vector<8x64xf32>
    %5 = tpu.matmul %3, %4, %cst_7 {dimension_numbers = #tpu.dot_dimension_numbers<[1], [0], [0], [1], [0, 0, 1, 1], [], []>} : vector<8x8xbf16>, vector<8x64xbf16>, vector<8x64xf32> -> vector<8x64xf32>
    %6 = arith.addf %2, %5 : vector<8x64xf32>
    %c0_8 = arith.constant 0 : index
    %c0_9 = arith.constant 0 : index
    %7 = vector.load %arg5[%c0_8, %c0_9] : memref<1x64xf32, #tpu.memory_space<vmem>>, vector<1x64xf32>
    %8 = vector.broadcast %7 : vector<1x64xf32> to vector<8x64xf32>
    %9 = arith.addf %6, %8 : vector<8x64xf32>
    %cst_10 = arith.constant 0.000000e+00 : f32
    %10 = vector.broadcast %cst_10 : f32 to vector<8x64xf32>
    %11 = arith.maximumf %9, %10 : vector<8x64xf32>
    %c0_11 = arith.constant 0 : index
    %c0_12 = arith.constant 0 : index
    %12 = vector.load %arg6[%c0_11, %c0_12] : memref<1x64xf32, #tpu.memory_space<vmem>>, vector<1x64xf32>
    %c0_13 = arith.constant 0 : index
    %c0_14 = arith.constant 0 : index
    %13 = vector.load %arg7[%c0_13, %c0_14] : memref<1x64xf32, #tpu.memory_space<vmem>>, vector<1x64xf32>
    %cst_15 = arith.constant dense<0.000000e+00> : vector<64xf32>
    %14 = vector.multi_reduction <add>, %11, %cst_15 [0] : vector<8x64xf32> to vector<64xf32>
    %15 = vector.shape_cast %14 : vector<64xf32> to vector<1x64xf32>
    %cst_16 = arith.constant 8.000000e+00 : f32
    %16 = vector.broadcast %cst_16 : f32 to vector<1x64xf32>
    %17 = arith.divf %15, %16 : vector<1x64xf32>
    %18 = vector.broadcast %17 : vector<1x64xf32> to vector<8x64xf32>
    %19 = arith.subf %11, %18 : vector<8x64xf32>
    %20 = arith.mulf %19, %19 : vector<8x64xf32>
    %cst_17 = arith.constant dense<0.000000e+00> : vector<64xf32>
    %21 = vector.multi_reduction <add>, %20, %cst_17 [0] : vector<8x64xf32> to vector<64xf32>
    %22 = vector.shape_cast %21 : vector<64xf32> to vector<1x64xf32>
    %cst_18 = arith.constant 8.000000e+00 : f32
    %23 = vector.broadcast %cst_18 : f32 to vector<1x64xf32>
    %24 = arith.divf %22, %23 : vector<1x64xf32>
    %cst_19 = arith.constant 9.99999974E-6 : f32
    %25 = vector.broadcast %cst_19 : f32 to vector<1x64xf32>
    %26 = arith.addf %24, %25 : vector<1x64xf32>
    %27 = math.rsqrt %26 : vector<1x64xf32>
    %28 = arith.mulf %27, %12 : vector<1x64xf32>
    %29 = arith.mulf %17, %28 : vector<1x64xf32>
    %30 = arith.subf %13, %29 : vector<1x64xf32>
    %31 = vector.broadcast %28 : vector<1x64xf32> to vector<8x64xf32>
    %32 = arith.mulf %11, %31 : vector<8x64xf32>
    %33 = vector.broadcast %30 : vector<1x64xf32> to vector<8x64xf32>
    %34 = arith.addf %32, %33 : vector<8x64xf32>
    %35 = arith.truncf %34 : vector<8x64xf32> to vector<8x64xbf16>
    %c0_20 = arith.constant 0 : index
    %c0_21 = arith.constant 0 : index
    %36 = vector.load %arg8[%c0_20, %c0_21] : memref<64x64xbf16, #tpu.memory_space<vmem>>, vector<64x64xbf16>
    %cst_22 = arith.constant dense<0.000000e+00> : vector<8x64xf32>
    %37 = tpu.matmul %35, %36, %cst_22 {dimension_numbers = #tpu.dot_dimension_numbers<[1], [0], [0], [1], [0, 0, 1, 1], [], []>} : vector<8x64xbf16>, vector<64x64xbf16>, vector<8x64xf32> -> vector<8x64xf32>
    %c0_23 = arith.constant 0 : index
    %c0_24 = arith.constant 0 : index
    %38 = vector.load %arg9[%c0_23, %c0_24] : memref<1x64xf32, #tpu.memory_space<vmem>>, vector<1x64xf32>
    %39 = vector.broadcast %38 : vector<1x64xf32> to vector<8x64xf32>
    %40 = arith.addf %37, %39 : vector<8x64xf32>
    %cst_25 = arith.constant 0.000000e+00 : f32
    %41 = vector.broadcast %cst_25 : f32 to vector<8x64xf32>
    %42 = arith.maximumf %40, %41 : vector<8x64xf32>
    %c0_26 = arith.constant 0 : index
    %c0_27 = arith.constant 0 : index
    %43 = vector.load %arg10[%c0_26, %c0_27] : memref<1x64xf32, #tpu.memory_space<vmem>>, vector<1x64xf32>
    %c0_28 = arith.constant 0 : index
    %c0_29 = arith.constant 0 : index
    %44 = vector.load %arg11[%c0_28, %c0_29] : memref<1x64xf32, #tpu.memory_space<vmem>>, vector<1x64xf32>
    %cst_30 = arith.constant dense<0.000000e+00> : vector<64xf32>
    %45 = vector.multi_reduction <add>, %42, %cst_30 [0] : vector<8x64xf32> to vector<64xf32>
    %46 = vector.shape_cast %45 : vector<64xf32> to vector<1x64xf32>
    %cst_31 = arith.constant 8.000000e+00 : f32
    %47 = vector.broadcast %cst_31 : f32 to vector<1x64xf32>
    %48 = arith.divf %46, %47 : vector<1x64xf32>
    %49 = vector.broadcast %48 : vector<1x64xf32> to vector<8x64xf32>
    %50 = arith.subf %42, %49 : vector<8x64xf32>
    %51 = arith.mulf %50, %50 : vector<8x64xf32>
    %cst_32 = arith.constant dense<0.000000e+00> : vector<64xf32>
    %52 = vector.multi_reduction <add>, %51, %cst_32 [0] : vector<8x64xf32> to vector<64xf32>
    %53 = vector.shape_cast %52 : vector<64xf32> to vector<1x64xf32>
    %cst_33 = arith.constant 8.000000e+00 : f32
    %54 = vector.broadcast %cst_33 : f32 to vector<1x64xf32>
    %55 = arith.divf %53, %54 : vector<1x64xf32>
    %cst_34 = arith.constant 9.99999974E-6 : f32
    %56 = vector.broadcast %cst_34 : f32 to vector<1x64xf32>
    %57 = arith.addf %55, %56 : vector<1x64xf32>
    %58 = math.rsqrt %57 : vector<1x64xf32>
    %59 = arith.mulf %58, %43 : vector<1x64xf32>
    %60 = arith.mulf %48, %59 : vector<1x64xf32>
    %61 = arith.subf %44, %60 : vector<1x64xf32>
    %62 = vector.broadcast %59 : vector<1x64xf32> to vector<8x64xf32>
    %63 = arith.mulf %42, %62 : vector<8x64xf32>
    %64 = vector.broadcast %61 : vector<1x64xf32> to vector<8x64xf32>
    %65 = arith.addf %63, %64 : vector<8x64xf32>
    %66 = arith.truncf %65 : vector<8x64xf32> to vector<8x64xbf16>
    %c0_35 = arith.constant 0 : index
    %c0_36 = arith.constant 0 : index
    %67 = vector.load %arg12[%c0_35, %c0_36] : memref<64x32xbf16, #tpu.memory_space<vmem>>, vector<64x32xbf16>
    %cst_37 = arith.constant dense<0.000000e+00> : vector<8x32xf32>
    %68 = tpu.matmul %66, %67, %cst_37 {dimension_numbers = #tpu.dot_dimension_numbers<[1], [0], [0], [1], [0, 0, 1, 1], [], []>} : vector<8x64xbf16>, vector<64x32xbf16>, vector<8x32xf32> -> vector<8x32xf32>
    %c0_38 = arith.constant 0 : index
    %c0_39 = arith.constant 0 : index
    %69 = vector.load %arg13[%c0_38, %c0_39] : memref<1x32xf32, #tpu.memory_space<vmem>>, vector<1x32xf32>
    %70 = vector.broadcast %69 : vector<1x32xf32> to vector<8x32xf32>
    %71 = arith.addf %68, %70 : vector<8x32xf32>
    %cst_40 = arith.constant 0.000000e+00 : f32
    %72 = vector.broadcast %cst_40 : f32 to vector<8x32xf32>
    %73 = arith.maximumf %71, %72 : vector<8x32xf32>
    %c0_41 = arith.constant 0 : index
    %74 = memref.load %arg0[%c0_41] : memref<1xi32, #tpu.memory_space<smem>>
    %75 = tpu.iota {dimensions = array<i32: 0>} : vector<8x32xi32>
    %76 = tpu.iota {dimensions = array<i32: 1>} : vector<8x32xi32>
    %c32_i32 = arith.constant 32 : i32
    %77 = vector.broadcast %c32_i32 : i32 to vector<8x32xi32>
    %78 = arith.muli %75, %77 : vector<8x32xi32>
    %79 = arith.addi %78, %76 : vector<8x32xi32>
    %c-1640531527_i32 = arith.constant -1640531527 : i32
    %80 = arith.muli %74, %c-1640531527_i32 : i32
    %81 = vector.broadcast %80 : i32 to vector<8x32xi32>
    %82 = arith.addi %79, %81 : vector<8x32xi32>
    %c16_i32 = arith.constant 16 : i32
    %83 = vector.broadcast %c16_i32 : i32 to vector<8x32xi32>
    %84 = arith.shrsi %82, %83 : vector<8x32xi32>
    %c65535_i32 = arith.constant 65535 : i32
    %85 = vector.broadcast %c65535_i32 : i32 to vector<8x32xi32>
    %86 = arith.andi %84, %85 : vector<8x32xi32>
    %87 = arith.xori %82, %86 : vector<8x32xi32>
    %c-2048144789_i32 = arith.constant -2048144789 : i32
    %88 = vector.broadcast %c-2048144789_i32 : i32 to vector<8x32xi32>
    %89 = arith.muli %87, %88 : vector<8x32xi32>
    %c13_i32 = arith.constant 13 : i32
    %90 = vector.broadcast %c13_i32 : i32 to vector<8x32xi32>
    %91 = arith.shrsi %89, %90 : vector<8x32xi32>
    %c524287_i32 = arith.constant 524287 : i32
    %92 = vector.broadcast %c524287_i32 : i32 to vector<8x32xi32>
    %93 = arith.andi %91, %92 : vector<8x32xi32>
    %94 = arith.xori %89, %93 : vector<8x32xi32>
    %c-1028477387_i32 = arith.constant -1028477387 : i32
    %95 = vector.broadcast %c-1028477387_i32 : i32 to vector<8x32xi32>
    %96 = arith.muli %94, %95 : vector<8x32xi32>
    %c16_i32_42 = arith.constant 16 : i32
    %97 = vector.broadcast %c16_i32_42 : i32 to vector<8x32xi32>
    %98 = arith.shrsi %96, %97 : vector<8x32xi32>
    %c65535_i32_43 = arith.constant 65535 : i32
    %99 = vector.broadcast %c65535_i32_43 : i32 to vector<8x32xi32>
    %100 = arith.andi %98, %99 : vector<8x32xi32>
    %101 = arith.xori %96, %100 : vector<8x32xi32>
    %c-2147483648_i32 = arith.constant -2147483648 : i32
    %102 = vector.broadcast %c-2147483648_i32 : i32 to vector<8x32xi32>
    %103 = arith.xori %101, %102 : vector<8x32xi32>
    %c1288490189_i32 = arith.constant 1288490189 : i32
    %104 = vector.broadcast %c1288490189_i32 : i32 to vector<8x32xi32>
    %105 = arith.cmpi slt, %103, %104 : vector<8x32xi32>
    %cst_44 = arith.constant 1.250000e+00 : f32
    %106 = vector.broadcast %cst_44 : f32 to vector<8x32xf32>
    %107 = arith.mulf %73, %106 : vector<8x32xf32>
    %cst_45 = arith.constant 0.000000e+00 : f32
    %108 = vector.broadcast %cst_45 : f32 to vector<8x32xf32>
    %109 = arith.select %105, %107, %108 : vector<8x32xi1>, vector<8x32xf32>
    %c0_46 = arith.constant 0 : index
    %c0_47 = arith.constant 0 : index
    %110 = vector.load %arg14[%c0_46, %c0_47] : memref<1x32xbf16, #tpu.memory_space<vmem>>, vector<1x32xbf16>
    %111 = arith.truncf %109 : vector<8x32xf32> to vector<8x32xbf16>
    %cst_48 = arith.constant dense<0.000000e+00> : vector<1x8xf32>
    %112 = tpu.matmul %110, %111, %cst_48 {dimension_numbers = #tpu.dot_dimension_numbers<[1], [1], [0], [0], [0, 0, 1, 0], [], []>} : vector<1x32xbf16>, vector<8x32xbf16>, vector<1x8xf32> -> vector<1x8xf32>
    %c0_49 = arith.constant 0 : index
    %c0_50 = arith.constant 0 : index
    %113 = vector.load %arg15[%c0_49, %c0_50] : memref<1x1xf32, #tpu.memory_space<vmem>>, vector<1x1xf32>
    %114 = vector.broadcast %113 : vector<1x1xf32> to vector<1x8xf32>
    %115 = arith.addf %112, %114 : vector<1x8xf32>
    %cst_51 = arith.constant 0.000000e+00 : f32
    %116 = vector.broadcast %cst_51 : f32 to vector<1x8xf32>
    %117 = arith.subf %116, %115 : vector<1x8xf32>
    %118 = math.exp %117 : vector<1x8xf32>
    %cst_52 = arith.constant 1.000000e+00 : f32
    %119 = vector.broadcast %cst_52 : f32 to vector<1x8xf32>
    %120 = arith.addf %119, %118 : vector<1x8xf32>
    %121 = tpu.reciprocal %120 {approx = true} : vector<1x8xf32> -> vector<1x8xf32>
    %c0_53 = arith.constant 0 : index
    %c0_54 = arith.constant 0 : index
    %122 = vector.load %arg16[%c0_53, %c0_54] : memref<1x8xf32, #tpu.memory_space<vmem>>, vector<1x8xf32>
    tpu.vector_store %arg16[%c0_53, %c0_54], %121 {strides = array<i32>} : memref<1x8xf32, #tpu.memory_space<vmem>>, vector<1x8xf32>,
    return
  }
}

</mosaic_0001>

<llo_original>
// kernel: tpu_custom_call.1
$region0: #{tpu_custom_call.1}
  #allocation0 [shape = 'u32[]', space=smem, size = 0x4, offset = 0x4, fixed_abs, tag = 'smem constant byte address 0x4 - core index']
  #allocation1 [shape = 'u32[72,128]{1,0:T(1,128)}', space=vmem, size = 0x9000, scoped, tag = 'internal scratch']
  #allocation2 [shape = 's32[1]{0:T(128)S(6)}', space=smem, size = 0x200, scoped, tag = 'scoped memory for tpu_custom_call.1']
  #allocation3 [shape = 'f32[1,1]{1,0:T(1,128)S(1)}', space=vmem, size = 0x200, scoped, tag = 'scoped memory for tpu_custom_call.1']
  %s0 = inlined_call_operand.<no memory space> [shape: s32[1], index: 0, kind: input, shape index: {}]
  %s1 = inlined_call_operand.vmem [shape: bf16[8,16], index: 1, kind: input, shape index: {}]
  %s2 = inlined_call_operand.vmem [shape: bf16[8,8], index: 2, kind: input, shape index: {}]
  %s3 = inlined_call_operand.vmem [shape: bf16[16,64], index: 3, kind: input, shape index: {}]
  %s4 = inlined_call_operand.vmem [shape: bf16[8,64], index: 4, kind: input, shape index: {}]
  %s5 = inlined_call_operand.vmem [shape: f32[1,64], index: 5, kind: input, shape index: {}]
  %s6 = inlined_call_operand.vmem [shape: f32[1,64], index: 6, kind: input, shape index: {}]
  %s7 = inlined_call_operand.vmem [shape: f32[1,64], index: 7, kind: input, shape index: {}]
  %s8 = inlined_call_operand.vmem [shape: bf16[64,64], index: 8, kind: input, shape index: {}]
  %s9 = inlined_call_operand.vmem [shape: f32[1,64], index: 9, kind: input, shape index: {}]
  %s10 = inlined_call_operand.vmem [shape: f32[1,64], index: 10, kind: input, shape index: {}]
  %s11 = inlined_call_operand.vmem [shape: f32[1,64], index: 11, kind: input, shape index: {}]
  %s12 = inlined_call_operand.vmem [shape: bf16[64,32], index: 12, kind: input, shape index: {}]
  %s13 = inlined_call_operand.vmem [shape: f32[1,32], index: 13, kind: input, shape index: {}]
  %s14 = inlined_call_operand.vmem [shape: bf16[1,32], index: 14, kind: input, shape index: {}]
  %s15 = inlined_call_operand.<no memory space> [shape: f32[1,1], index: 15, kind: input, shape index: {}]
  %s16 = inlined_call_operand.hbm [shape: f32[1,8], index: 16, kind: output, shape index: {}]
  %s17 = sld [smem:[#allocation0]]
  $region74: #{tpu_custom_call.1} parent=0
    _
  %s19 = ssub.s32 1, %s17
  %s20 = scalar_select 0, %s19, %s17
  %21 = sst [smem:[#allocation2]] %s0
  %v22 = vstv %s15
  %23 = vst [vmem:[#allocation3] sm:$0x1] %v22
  $region1: #{tpu_custom_call.1} parent=0
    #allocation4 [shape = 'u8[512]{0}', space=vmem, size = 0x400, scoped, tag = 'output window, operand 0, single buffered']
    #allocation5 [shape = 's32[1]{0}', space=sflag, size = 0x4, scoped, tag = 'scoped memory for tpu_custom_call.1']
    %24 = vsyncpa [#allocation5], 0
    // Predicated region
    $region2: #{tpu_custom_call.1} parent=1 // pred_check
      _
    $region3: #{tpu_custom_call.1} parent=1 // pred_check_branch
      %26 = sbr.rel (0) target = $region5
    $region4: #{tpu_custom_call.1} parent=1 // pred_region
      _
    $region5: #{tpu_custom_call.1} parent=1 // pred_fallthru
      _
    // Predicated region
    $region6: #{tpu_custom_call.1} parent=1 // pred_check
      _
    $region7: #{tpu_custom_call.1} parent=1 // pred_check_branch
      %28 = sbr.rel (0) target = $region9
    $region8: #{tpu_custom_call.1} parent=1 // pred_region
      _
    $region9: #{tpu_custom_call.1} parent=1 // pred_fallthru
      _
    // Predicated region
    $region10: #{tpu_custom_call.1} parent=1 // pred_check
      _
    $region11: #{tpu_custom_call.1} parent=1 // pred_check_branch
      %30 = sbr.rel (0) target = $region13
    $region12: #{tpu_custom_call.1} parent=1 // pred_region
      _
    $region13: #{tpu_custom_call.1} parent=1 // pred_fallthru
      _
    // Predicated region
    $region14: #{tpu_custom_call.1} parent=1 // pred_check
      _
    $region15: #{tpu_custom_call.1} parent=1 // pred_check_branch
      %32 = sbr.rel (0) target = $region17
    $region16: #{tpu_custom_call.1} parent=1 // pred_region
      _
    $region17: #{tpu_custom_call.1} parent=1 // pred_fallthru
      _
    // Predicated region
    $region18: #{tpu_custom_call.1} parent=1 // pred_check
      _
    $region19: #{tpu_custom_call.1} parent=1 // pred_check_branch
      %34 = sbr.rel (0) target = $region21
    $region20: #{tpu_custom_call.1} parent=1 // pred_region
      _
    $region21: #{tpu_custom_call.1} parent=1 // pred_fallthru
      _
    // Predicated region
    $region22: #{tpu_custom_call.1} parent=1 // pred_check
      _
    $region23: #{tpu_custom_call.1} parent=1 // pred_check_branch
      %36 = sbr.rel (0) target = $region25
    $region24: #{tpu_custom_call.1} parent=1 // pred_region
      _
    $region25: #{tpu_custom_call.1} parent=1 // pred_fallthru
      _
    // Predicated region
    $region26: #{tpu_custom_call.1} parent=1 // pred_check
      _
    $region27: #{tpu_custom_call.1} parent=1 // pred_check_branch
      %38 = sbr.rel (0) target = $region29
    $region28: #{tpu_custom_call.1} parent=1 // pred_region
      _
    $region29: #{tpu_custom_call.1} parent=1 // pred_fallthru
      _
    // Predicated region
    $region30: #{tpu_custom_call.1} parent=1 // pred_check
      _
    $region31: #{tpu_custom_call.1} parent=1 // pred_check_branch
      %40 = sbr.rel (0) target = $region33
    $region32: #{tpu_custom_call.1} parent=1 // pred_region
      _
    $region33: #{tpu_custom_call.1} parent=1 // pred_fallthru
      _
    // Predicated region
    $region34: #{tpu_custom_call.1} parent=1 // pred_check
      _
    $region35: #{tpu_custom_call.1} parent=1 // pred_check_branch
      %42 = sbr.rel (0) target = $region37
    $region36: #{tpu_custom_call.1} parent=1 // pred_region
      _
    $region37: #{tpu_custom_call.1} parent=1 // pred_fallthru
      _
    // Predicated region
    $region38: #{tpu_custom_call.1} parent=1 // pred_check
      _
    $region39: #{tpu_custom_call.1} parent=1 // pred_check_branch
      %44 = sbr.rel (0) target = $region41
    $region40: #{tpu_custom_call.1} parent=1 // pred_region
      _
    $region41: #{tpu_custom_call.1} parent=1 // pred_fallthru
      _
    // Predicated region
    $region42: #{tpu_custom_call.1} parent=1 // pred_check
      _
    $region43: #{tpu_custom_call.1} parent=1 // pred_check_branch
      %46 = sbr.rel (0) target = $region45
    $region44: #{tpu_custom_call.1} parent=1 // pred_region
      _
    $region45: #{tpu_custom_call.1} parent=1 // pred_fallthru
      _
    // Predicated region
    $region46: #{tpu_custom_call.1} parent=1 // pred_check
      _
    $region47: #{tpu_custom_call.1} parent=1 // pred_check_branch
      %48 = sbr.rel (0) target = $region49
    $region48: #{tpu_custom_call.1} parent=1 // pred_region
      _
    $region49: #{tpu_custom_call.1} parent=1 // pred_fallthru
      _
    // Predicated region
    $region50: #{tpu_custom_call.1} parent=1 // pred_check
      _
    $region51: #{tpu_custom_call.1} parent=1 // pred_check_branch
      %50 = sbr.rel (0) target = $region53
    $region52: #{tpu_custom_call.1} parent=1 // pred_region
      _
    $region53: #{tpu_custom_call.1} parent=1 // pred_fallthru
      _
    // Predicated region
    $region54: #{tpu_custom_call.1} parent=1 // pred_check
      _
    $region55: #{tpu_custom_call.1} parent=1 // pred_check_branch
      %52 = sbr.rel (0) target = $region57
    $region56: #{tpu_custom_call.1} parent=1 // pred_region
      _
    $region57: #{tpu_custom_call.1} parent=1 // pred_fallthru
      _
    // Predicated region
    $region58: #{tpu_custom_call.1} parent=1 // pred_check
      _
    $region59: #{tpu_custom_call.1} parent=1 // pred_check_branch
      %54 = sbr.rel (0) target = $region61
    $region60: #{tpu_custom_call.1} parent=1 // pred_region
      _
    $region61: #{tpu_custom_call.1} parent=1 // pred_fallthru
      _
    // Predicated region
    $region62: #{tpu_custom_call.1} parent=1 // pred_check
      _
    $region63: #{tpu_custom_call.1} parent=1 // pred_check_branch
      %56 = sbr.rel (0) target = $region65
    $region64: #{tpu_custom_call.1} parent=1 // pred_region
      _
    $region65: #{tpu_custom_call.1} parent=1 // pred_fallthru
      _
    %v58 = vld [vmem:[%s1] sm:$0xf]
    %v59 = vld [vmem:[%s3] sm:$0xf]
    %v60 = vld [vmem:[%s3 + $0x4] sm:$0xf]
    %v61 = vld [vmem:[%s2] sm:$0xf]
    %v62 = vld [vmem:[%s4] sm:$0xf]
    %vm63 = vcmask 64512
    %v65 = vsel %vm63, %v61, 0
    %vm67 = vcmask 1043456
    %v69 = vsel %vm67, %v62, 0
    %71 = vmatpush.bf16.msra.mxu0 0
    %72 = vmatpush.bf16.msra.mxu0 0
    %73 = vmatpush.bf16.msra.mxu0 0
    %74 = vmatpush.bf16.msra.mxu0 0
    %75 = vmatpush.bf16.msra.mxu0 0
    %76 = vmatpush.bf16.msra.mxu0 0
    %77 = vmatpush.bf16.msra.mxu0 0
    %78 = vmatpush.bf16.msra.mxu0 %v69
    %79 = vmatmul.bf16.gmra.mxu0 %v65
    %v80 = vpop.f32.mrf.mxu0
    %v81 = vadd.f32 0.0, %v80
    %v82 = vpop.f32.mrf.mxu0
    %83 = vdwg.mxu0
    %v86 = vunpack.c.l.b16 %v59
    %v87 = vunpack.c.l.b16 %v60
    %v88 = vpack.c.b16 %v87, %v86
    %vm90 = vcmask 130048
    %v92 = vsel %vm90, %v58, 0
    %94 = vmatpush.bf16.msra.mxu0 0
    %95 = vmatpush.bf16.msra.mxu0 0
    %96 = vmatpush.bf16.msra.mxu0 0
    %97 = vmatpush.bf16.msra.mxu0 0
    %98 = vmatpush.bf16.msra.mxu0 0
    %99 = vmatpush.bf16.msra.mxu0 0
    %100 = vmatpush.bf16.msra.mxu0 0
    %101 = vmatpush.bf16.msra.mxu0 %v88
    %102 = vmatmul.bf16.gmra.mxu0 %v92
    %v103 = vpop.f32.mrf.mxu0
    %v104 = vadd.f32 %v81, %v103
    %v105 = vpop.f32.mrf.mxu0
    %106 = vdwg.mxu0
    %v107 = vld [vmem:[%s5] sm:$0x1]
    %v109 = vperm.slane %v107, 0
    %v111 = vadd.f32 %v104, %v109
    %v112 = vmax.f32 %v111, 0.0
    %v113 = vld [vmem:[%s6] sm:$0x1]
    %v114 = vld [vmem:[%s7] sm:$0x1]
    %vm115 = vcmask 523264
    %v116 = vsel %vm115, %v112, 0.0
    %v117 = vrot.slane %v116, 4
    %v118 = vadd.f32 %v116, %v117
    %v119 = vrot.slane %v118, 2
    %v120 = vadd.f32 %v118, %v119
    %v121 = vrot.slane %v120, 1
    %v122 = vadd.f32 %v120, %v121
    %v123 = vrcp.pop 8.0
    %v124 = vmul.f32 8.0, %v123
    %v125 = vsub.f32 1.0, %v124
    %v126 = vmul.f32 %v123, %v125
    %v127 = vadd.f32 %v123, %v126
    %vm128 = vweird.f32 %v123
    %v129 = vsel %vm128, %v123, %v127
    %v130 = vmul.f32 %v122, %v129
    %v131 = vsub.f32 %v112, %v130
    %v132 = vmul.f32 %v131, %v131
    %v133 = vsel %vm115, %v132, 0.0
    %v134 = vrot.slane %v133, 4
    %v135 = vadd.f32 %v133, %v134
    %v136 = vrot.slane %v135, 2
    %v137 = vadd.f32 %v135, %v136
    %v138 = vrot.slane %v137, 1
    %v139 = vadd.f32 %v137, %v138
    %v140 = vmul.f32 %v139, %v129
    %v141 = vadd.f32 %v140, 1e-05
    %v142 = vrsqrt.pop %v141
    %v143 = vmul.f32 %v142, %v141
    %v144 = vmul.f32 %v143, %v142
    %v145 = vmul.f32 0.5, %v144
    %v146 = vsub.f32 1.5, %v145
    %v147 = vmul.f32 %v142, %v146
    %vm148 = vweird.f32 %v141
    %vm149 = vweird.f32 %v142
    %vm150 = vmor %vm148, %vm149
    %v151 = vsel %vm150, %v142, %v147
    %v152 = vmul.f32 %v151, %v113
    %v153 = vmul.f32 %v130, %v152
    %v154 = vsub.f32 %v114, %v153
    %v155 = vperm.slane %v152, 0
    %v156 = vmul.f32 %v112, %v155
    %v158 = vperm.slane %v154, 0
    %v160 = vadd.f32 %v156, %v158
    %v161 = vpack.c.bf16 %v160, %v160
    %v162 = vld [vmem:[%s8] sm:$0xf]
    %v163 = vld [vmem:[%s8 + $0x4] sm:$0xf]
    %v164 = vld [vmem:[%s8 + $0x8] sm:$0xf]
    %v165 = vld [vmem:[%s8 + $0xc] sm:$0xf]
    %v166 = vld [vmem:[%s8 + $0x10] sm:$0xf]
    %v167 = vld [vmem:[%s8 + $0x14] sm:$0xf]
    %v168 = vld [vmem:[%s8 + $0x18] sm:$0xf]
    %v169 = vld [vmem:[%s8 + $0x1c] sm:$0xf]
    %v170 = vld [vmem:[%s9] sm:$0x1]
    %v172 = vperm.slane %v170, 0
    %v182 = vunpack.c.l.b16 %v162
    %v183 = vunpack.c.l.b16 %v163
    %v184 = vunpack.c.l.b16 %v164
    %v185 = vunpack.c.l.b16 %v165
    %v186 = vunpack.c.l.b16 %v166
    %v187 = vunpack.c.l.b16 %v167
    %v188 = vunpack.c.l.b16 %v168
    %v189 = vunpack.c.l.b16 %v169
    %v190 = vpack.c.b16 %v183, %v182
    %v191 = vpack.c.b16 %v185, %v184
    %v192 = vpack.c.b16 %v187, %v186
    %v193 = vpack.c.b16 %v189, %v188
    %v199 = vsel %vm115, %v161, 0
    %201 = vmatpush.bf16.msra.mxu0 0
    %202 = vmatpush.bf16.msra.mxu0 0
    %203 = vmatpush.bf16.msra.mxu0 0
    %204 = vmatpush.bf16.msra.mxu0 0
    %205 = vmatpush.bf16.msra.mxu0 %v193
    %206 = vmatpush.bf16.msra.mxu0 %v192
    %207 = vmatpush.bf16.msra.mxu0 %v191
    %208 = vmatpush.bf16.msra.mxu0 %v190
    %209 = vmatmul.bf16.gmra.mxu0 %v199
    %v210 = vpop.f32.mrf.mxu0
    %v211 = vadd.f32 %v172, %v210
    %v212 = vpop.f32.mrf.mxu0
    %213 = vdwg.mxu0
    %v214 = vmax.f32 %v211, 0.0
    %v215 = vld [vmem:[%s10] sm:$0x1]
    %v216 = vld [vmem:[%s11] sm:$0x1]
    %v217 = vsel %vm115, %v214, 0.0
    %v218 = vrot.slane %v217, 4
    %v219 = vadd.f32 %v217, %v218
    %v220 = vrot.slane %v219, 2
    %v221 = vadd.f32 %v219, %v220
    %v222 = vrot.slane %v221, 1
    %v223 = vadd.f32 %v221, %v222
    %v224 = vmul.f32 %v223, %v129
    %v225 = vsub.f32 %v214, %v224
    %v226 = vmul.f32 %v225, %v225
    %v227 = vsel %vm115, %v226, 0.0
    %v228 = vrot.slane %v227, 4
    %v229 = vadd.f32 %v227, %v228
    %v230 = vrot.slane %v229, 2
    %v231 = vadd.f32 %v229, %v230
    %v232 = vrot.slane %v231, 1
    %v233 = vadd.f32 %v231, %v232
    %v234 = vmul.f32 %v233, %v129
    %v235 = vadd.f32 %v234, 1e-05
    %v236 = vrsqrt.pop %v235
    %v237 = vmul.f32 %v236, %v235
    %v238 = vmul.f32 %v237, %v236
    %v239 = vmul.f32 0.5, %v238
    %v240 = vsub.f32 1.5, %v239
    %v241 = vmul.f32 %v236, %v240
    %vm242 = vweird.f32 %v235
    %vm243 = vweird.f32 %v236
    %vm244 = vmor %vm242, %vm243
    %v245 = vsel %vm244, %v236, %v241
    %v246 = vmul.f32 %v245, %v215
    %v247 = vmul.f32 %v224, %v246
    %v248 = vsub.f32 %v216, %v247
    %v249 = vperm.slane %v246, 0
    %v250 = vmul.f32 %v214, %v249
    %v252 = vperm.slane %v248, 0
    %v254 = vadd.f32 %v250, %v252
    %v255 = vpack.c.bf16 %v254, %v254
    %v256 = vld [vmem:[%s12] sm:$0xf]
    %v257 = vld [vmem:[%s12 + $0x4] sm:$0xf]
    %v258 = vld [vmem:[%s12 + $0x8] sm:$0xf]
    %v259 = vld [vmem:[%s12 + $0xc] sm:$0xf]
    %v260 = vld [vmem:[%s12 + $0x10] sm:$0xf]
    %v261 = vld [vmem:[%s12 + $0x14] sm:$0xf]
    %v262 = vld [vmem:[%s12 + $0x18] sm:$0xf]
    %v263 = vld [vmem:[%s12 + $0x1c] sm:$0xf]
    %v264 = vld [vmem:[%s13] sm:$0x1]
    %v266 = vperm.slane %v264, 0
    %v276 = vunpack.c.l.b16 %v256
    %v277 = vunpack.c.l.b16 %v257
    %v278 = vunpack.c.l.b16 %v258
    %v279 = vunpack.c.l.b16 %v259
    %v280 = vunpack.c.l.b16 %v260
    %v281 = vunpack.c.l.b16 %v261
    %v282 = vunpack.c.l.b16 %v262
    %v283 = vunpack.c.l.b16 %v263
    %v284 = vpack.c.b16 %v277, %v276
    %v285 = vpack.c.b16 %v279, %v278
    %v286 = vpack.c.b16 %v281, %v280
    %v287 = vpack.c.b16 %v283, %v282
    %v293 = vsel %vm115, %v255, 0
    %295 = vmatpush.bf16.msra.mxu0 0
    %296 = vmatpush.bf16.msra.mxu0 0
    %297 = vmatpush.bf16.msra.mxu0 0
    %298 = vmatpush.bf16.msra.mxu0 0
    %299 = vmatpush.bf16.msra.mxu0 %v287
    %300 = vmatpush.bf16.msra.mxu0 %v286
    %301 = vmatpush.bf16.msra.mxu0 %v285
    %302 = vmatpush.bf16.msra.mxu0 %v284
    %303 = vmatmul.bf16.gmra.mxu0 %v293
    %v304 = vpop.f32.mrf.mxu0
    %v305 = vadd.f32 %v266, %v304
    %v306 = vpop.f32.mrf.mxu0
    %307 = vdwg.mxu0
    %v308 = vmax.f32 %v305, 0.0
    %s309 = sld [smem:[#allocation2]]
    %v310 = vlaneseq
    %v311 = vshrl.u32 %v310, 7
    %v312 = vlaneseq
    %v313 = vand.u32 %v312, 127
    %v314 = vmul.u32 %v311, 32
    %v315 = vadd.s32 %v314, %v313
    %s316 = smul.u32 %s309, 2654435769
    %v317 = vstv %s316
    %v318 = vadd.s32 %v315, %v317
    %v319 = vshra.s32 %v318, 16
    %v320 = vand.u32 %v319, 65535
    %v321 = vxor.u32 %v318, %v320
    %v322 = vmul.u32 %v321, 2246822507
    %v323 = vshra.s32 %v322, 13
    %v324 = vand.u32 %v323, 524287
    %v325 = vxor.u32 %v322, %v324
    %v326 = vmul.u32 %v325, 3266489909
    %v327 = vshra.s32 %v326, 16
    %v328 = vand.u32 %v327, 65535
    %v329 = vxor.u32 %v326, %v328
    %v330 = vxor.u32 %v329, 2147483648
    %vm331 = vcmp.lt.s32.totalorder %v330, 1288490189
    %v332 = vmul.f32 %v308, 1.25
    %v333 = vsel %vm331, %v332, 0.0
    %v334 = vld [vmem:[%s14] sm:$0x1]
    %v335 = vpack.c.bf16 %v333, %v333
    %v336 = vld [vmem:[#allocation3] sm:$0x1]
    %338 = vset.pattern.permute.xlu0 0
    %339 = vperm.xlu0 %338, %v336
    %v340 = vpop.permute.xlu0 %339
    %v342 = vperm.slane %v340, 0
    %vm343 = vcmask 261120
    %v345 = vsel %vm343, %v334, 0
    %v348 = vsel %vm343, %v335, 0
    %350 = vmatpush.bf16.xpose.msra.mxu0 0
    %351 = vmatpush.bf16.xpose.msra.mxu0 0
    %352 = vmatpush.bf16.xpose.msra.mxu0 0
    %353 = vmatpush.bf16.xpose.msra.mxu0 0
    %354 = vmatpush.bf16.xpose.msra.mxu0 0
    %355 = vmatpush.bf16.xpose.msra.mxu0 0
    %356 = vmatpush.bf16.xpose.msra.mxu0 0
    %357 = vmatpush.bf16.xpose.msra.mxu0 %v348
    %358 = vmatmul.bf16.gmra.mxu0 %v345
    %v359 = vpop.f32.mrf.mxu0
    %v360 = vadd.f32 %v342, %v359
    %v361 = vpop.f32.mrf.mxu0
    %362 = vdwg.mxu0
    %v363 = vsub.f32 0.0, %v360
    %v364 = vmul.f32 %v363, 1.442695
    %v365 = vpow.pop %v364
    %v366 = vadd.f32 %v365, 1.0
    %v367 = vrcp.pop %v366
    %vm368 = vcmask 57344
    %369 = vst.msk [vmem:[#allocation4] sm:$0x1] %vm368, %v367
    // Predicated region
    $region66: #{tpu_custom_call.1} parent=1 // pred_check
      _
    $region67: #{tpu_custom_call.1} parent=1 // pred_check_branch
      %371 = sbr.rel (0) target = $region69
    $region68: #{tpu_custom_call.1} parent=1 // pred_region
      %373 = vsyncadd [#allocation5], 0
      %s375 = sshll.u32 [#allocation4], 4
      %s376 = int_to_ptr.vmem [resolvable:$true] %s375
      %s377 = sshll.u32 %s16, 4
      %s378 = int_to_ptr.hbm [resolvable:$true] %s377
      %380 = dma.vmem_to_hbm [thread:$0]  %s376, 16, %s378, [#allocation5]
    $region69: #{tpu_custom_call.1} parent=1 // pred_fallthru
      _
    // Predicated region
    $region70: #{tpu_custom_call.1} parent=1 // pred_check
      _
    $region71: #{tpu_custom_call.1} parent=1 // pred_check_branch
      %382 = sbr.rel (0) target = $region73
    $region72: #{tpu_custom_call.1} parent=1 // pred_region
      %384 = dma.done [#allocation5], 16
    $region73: #{tpu_custom_call.1} parent=1 // pred_fallthru
      _
    %385 = vsyncpa [#allocation5], 1

</llo_original>
